<compile_context>
chip_gen: v5e
topology: v5e:2x2
jax: 0.10.0
libtpu: 0.0.40
codegen_flags: <defaults>
</compile_context>

<pallas_src>
import jax
import jax.numpy as jnp
from jax import lax
from jax.experimental import pallas as pl
from jax.experimental.pallas import tpu as pltpu


def _round_up(x, m):
    return ((x + m - 1) // m) * m


def _pick_tile_s(s_pad, cap_rows):
    """Largest multiple of 128 that divides s_pad and is <= cap_rows."""
    n = s_pad // 128
    cap = max(cap_rows // 128, 1)
    for t in range(min(cap, n), 0, -1):
        if n % t == 0:
            return t * 128
    return 128


def _vmem_limit_bytes(tile_s, dim, hid, out_dim, emb_itemsize, w_itemsize):
    """Scoped-VMEM request derived from the actual tile working set (+headroom)."""
    emb = 2 * tile_s * dim * emb_itemsize                    # double-buffered token tile
    out = 2 * out_dim * tile_s * 4                           # double-buffered f32 output
    weights = 2 * ((hid * dim + hid * hid + out_dim * hid) * w_itemsize
                   + 2 * hid * 4 + hid * 4)                  # weights + biases + hs column
    interm = 6 * hid * tile_s * 4                            # (H, T) f32/bf16 temporaries
    total = emb + out + weights + interm
    return int(min(max(2 * total, 16 * 1024 * 1024), 64 * 1024 * 1024))


def _marking_head_kernel(emb_ref, hs_ref,
                         w1_ref, b1_ref,
                         w2_ref, b2_ref,
                         wp_ref,
                         out_ref):
    """One (batch-row, seq-tile) step of MarkingHead, computed feature-major.

    emb_ref : (1, T, D)  token embeddings for this tile (original dtype, e.g. f32)
    hs_ref  : (1, H, 1)  precomputed relu(sentence_fc(cls)) for this batch row (f32)
    w*_ref  : weights in PyTorch (out_features, in_features) layout (compute dtype)
    b*_ref  : (H, 1) float32 biases
    wp_ref  : (2, H) prediction weight (bias=False)
    out_ref : (1, 2, T) float32 log-softmax (tokens along lanes -> lane-dense stores)
    """
    cd = w1_ref.dtype

    # Cast after the VMEM load (no separate HBM cast pass in the wrapper).
    emb = emb_ref[0].astype(cd)                                       # (T, D)

    # fc1: contract on D without an explicit transpose: (H,D) x (T,D) -> (H,T).
    h = lax.dot_general(w1_ref[...], emb,
                        dimension_numbers=(((1,), (1,)), ((), ())),
                        preferred_element_type=jnp.float32) + b1_ref[...]
    # relu(fc1(emb)) + hoisted relu(sentence_fc(cls)); hs broadcasts over the lanes.
    x = (jnp.maximum(h, 0.0) + hs_ref[0]).astype(cd)                  # (H, T)

    # relu(fc2(x))
    h2 = jnp.dot(w2_ref[...], x,
                 preferred_element_type=jnp.float32) + b2_ref[...]    # (H, T) f32
    x2 = jnp.maximum(h2, 0.0).astype(cd)

    # prediction (no bias) + 2-class log-softmax (softplus form, one exp).
    logits = jnp.dot(wp_ref[...], x2,
                     preferred_element_type=jnp.float32)              # (2, T) f32
    l0 = logits[0:1, :]
    d = logits[1:2, :] - l0                                           # (1, T)
    lse = l0 + jnp.maximum(d, 0.0) + jnp.log(1.0 + jnp.exp(-jnp.abs(d)))
    out_ref[0] = (logits - lse).astype(out_ref.dtype)                 # (2, T)


def _marking_head_call(emb, hs, w1, b1, w2, b2, wp, *, tile_s):
    """emb: (B, S_pad, D) in its original dtype; hs: (B, H, 1) f32; weights in
    (out,in) layout.  Returns (B, 2, S_pad) float32 log-probs (class-major)."""
    B, S_pad, D = emb.shape
    H = w1.shape[0]
    OUT = wp.shape[0]
    grid = (B, S_pad // tile_s)

    in_specs = [
        pl.BlockSpec((1, tile_s, D), lambda b, s: (b, s, 0)),   # token tile
        pl.BlockSpec((1, H, 1), lambda b, s: (b, 0, 0)),        # sentence branch (per row)
        pl.BlockSpec((H, D), lambda b, s: (0, 0)),              # fc1 weight
        pl.BlockSpec((H, 1), lambda b, s: (0, 0)),              # fc1 bias
        pl.BlockSpec((H, H), lambda b, s: (0, 0)),              # fc2 weight
        pl.BlockSpec((H, 1), lambda b, s: (0, 0)),              # fc2 bias
        pl.BlockSpec((OUT, H), lambda b, s: (0, 0)),            # prediction weight
    ]
    out_spec = pl.BlockSpec((1, OUT, tile_s), lambda b, s: (b, 0, s))

    return pl.pallas_call(
        _marking_head_kernel,
        out_shape=jax.ShapeDtypeStruct((B, OUT, S_pad), jnp.float32),
        grid_spec=pltpu.PrefetchScalarGridSpec(
            num_scalar_prefetch=0,
            grid=grid,
            in_specs=in_specs,
            out_specs=out_spec,
        ),
        compiler_params=pltpu.CompilerParams(
            # No carried state -> both axes parallel (full megacore use on v7x).
            dimension_semantics=("parallel", "parallel"),
            vmem_limit_bytes=_vmem_limit_bytes(
                tile_s, D, H, OUT, emb.dtype.itemsize, w1.dtype.itemsize),
        ),
    )(emb, hs, w1, b1, w2, b2, wp)


def _automark_forward(embeddings, cls, params, *, tile_rows=2048,
                      compute_dtype=jnp.bfloat16):
    """embeddings: (B, S, D) token embeddings ("bert_output[0]"),
       cls:        (B, D)    pooled output   ("bert_output[1]").
       Returns (B, S, 2) float32 log-softmax markings.

       tile_rows: cap on tokens per grid step; the actual tile is the largest
       128-multiple divisor of the (minimally) padded sequence length <= this cap.
       The working set at 2048 rows is only a few MiB -> safe on all generations."""
    B, S, D = embeddings.shape
    H = params["w1"].shape[0]
    cd = compute_dtype

    # Minimal lane-alignment padding only (multiple of 128, not of the full tile).
    S_pad = _round_up(S, 128)
    tile_s = _pick_tile_s(S_pad, tile_rows)
    if S_pad != S:
        embeddings = jnp.pad(embeddings, ((0, 0), (0, S_pad - S), (0, 0)))

    # Small weights: cast once (negligible traffic).
    w1 = params["w1"].astype(cd)
    w2 = params["w2"].astype(cd)
    wp = params["wp"].astype(cd)
    b1 = params["b1"].astype(jnp.float32)[:, None]               # (H, 1)
    b2 = params["b2"].astype(jnp.float32)[:, None]

    # Hoisted sentence branch: tiny (B,D)@(D,H) matmul in XLA, fed per batch row.
    hs = jnp.dot(cls.astype(cd), params["ws"].astype(cd).T,
                 preferred_element_type=jnp.float32)
    hs = jnp.maximum(hs + params["bs"].astype(jnp.float32), 0.0)  # (B, H) f32
    hs = hs[:, :, None]                                           # (B, H, 1)

    out_t = _marking_head_call(embeddings, hs, w1, b1, w2, b2, wp,
                               tile_s=tile_s)                      # (B, 2, S_pad)
    # Tiny output (B*S*2 f32): transpose/slice fuse under jit.
    return jnp.transpose(out_t, (0, 2, 1))[:, :S, :]


automark_forward = jax.jit(_automark_forward,
                           static_argnames=("tile_rows", "compute_dtype"))


def init_params(key, dim, hidden_dim, out_dim=2):
    """Synthetic params in PyTorch nn.Linear layout: weight = (out_features, in_features)."""
    ks = jax.random.split(key, 7)
    s_in = 1.0 / (dim ** 0.5)
    s_h = 1.0 / (hidden_dim ** 0.5)
    u = jax.random.uniform
    return {
        "w1": u(ks[0], (hidden_dim, dim), jnp.float32, -s_in, s_in),
        "b1": u(ks[1], (hidden_dim,), jnp.float32, -s_in, s_in),
        "ws": u(ks[2], (hidden_dim, dim), jnp.float32, -s_in, s_in),
        "bs": u(ks[3], (hidden_dim,), jnp.float32, -s_in, s_in),
        "w2": u(ks[4], (hidden_dim, hidden_dim), jnp.float32, -s_h, s_h),
        "b2": u(ks[5], (hidden_dim,), jnp.float32, -s_h, s_h),
        "wp": u(ks[6], (out_dim, hidden_dim), jnp.float32, -s_h, s_h),   # bias=False
    }


def _reference(embeddings, cls, params, compute_dtype):
    """Plain-JAX MarkingHead (original broadcast-cls form), mirroring kernel dtypes."""
    B, S, D = embeddings.shape
    cd = compute_dtype
    emb = embeddings.astype(cd).reshape(-1, D)
    cls_r = jnp.broadcast_to(cls[:, None, :], (B, S, D)).reshape(-1, D).astype(cd)

    def lin(x, w, b=None):
        y = jnp.dot(x, w.astype(cd).T, preferred_element_type=jnp.float32)
        if b is not None:
            y = y + b.astype(jnp.float32)
        return y

    x = jax.nn.relu(lin(emb, params["w1"], params["b1"])) + \
        jax.nn.relu(lin(cls_r, params["ws"], params["bs"]))
    x = jax.nn.relu(lin(x.astype(cd), params["w2"], params["b2"]))
    logits = lin(x.astype(cd), params["wp"])
    return jax.nn.log_softmax(logits, axis=-1).reshape(B, S, -1)


if __name__ == "__main__":
    # Small shapes: batch=2, seq=300 (exercises minimal padding to 384),
    # bert hidden D=128, marking-head hidden H=128.
    B, S, D, H = 2, 300, 128, 128

    key = jax.random.PRNGKey(0)
    k_emb, k_cls, k_par = jax.random.split(key, 3)

    # TODO(synk): BertModel/BertTokenizer (pretrained) are not reimplemented;
    # synthetic embeddings / pooled-CLS stand in for bert_output[0] / bert_output[1].
    embeddings = jax.random.normal(k_emb, (B, S, D), jnp.float32)
    cls = jax.random.normal(k_cls, (B, D), jnp.float32)
    params = init_params(k_par, D, H)

    # bf16 MXU inputs (performance default), f32 accumulation / elementwise math.
    out = jax.block_until_ready(
        automark_forward(embeddings, cls, params, compute_dtype=jnp.bfloat16))
    assert out.shape == (B, S, 2), out.shape
    assert bool(jnp.all(jnp.isfinite(out)))
    ref = _reference(embeddings, cls, params, jnp.bfloat16)
    err = float(jnp.max(jnp.abs(out - ref)))
    assert jnp.allclose(out, ref, atol=2e-2, rtol=2e-2), err

    # f32 compute path also supported.
    out32 = jax.block_until_ready(
        automark_forward(embeddings, cls, params, compute_dtype=jnp.float32))
    ref32 = _reference(embeddings, cls, params, jnp.float32)
    err32 = float(jnp.max(jnp.abs(out32 - ref32)))
    assert jnp.allclose(out32, ref32, atol=2e-2, rtol=2e-2), err32

    print("KERNEL_OK")
</pallas_src>

<mosaic_0001>
module attributes {stable_mosaic.version = 11 : i64} {
  func.func @_marking_head_kernel(%arg0: i32, %arg1: i32, %arg2: memref<1x384x128xf32, #tpu.memory_space<vmem>>, %arg3: memref<1x128x1xf32, #tpu.memory_space<vmem>>, %arg4: memref<128x128xbf16, #tpu.memory_space<vmem>>, %arg5: memref<128x1xf32, #tpu.memory_space<vmem>>, %arg6: memref<128x128xbf16, #tpu.memory_space<vmem>>, %arg7: memref<128x1xf32, #tpu.memory_space<vmem>>, %arg8: memref<2x128xbf16, #tpu.memory_space<vmem>>, %arg9: memref<1x2x384xf32, #tpu.memory_space<vmem>>) attributes {dimension_semantics = [#tpu.dimension_semantics<parallel>, #tpu.dimension_semantics<parallel>], iteration_bounds = array<i64: 2, 1>, scalar_prefetch = 0 : i64, scratch_operands = 0 : i64, tpu.core_type = #tpu.core_type<tc>, window_params = [{transform_indices = @transform_0, window_bounds = array<i64: 1, 384, 128>}, {transform_indices = @transform_1, window_bounds = array<i64: 1, 128, 1>}, {pipeline_mode = #tpu.pipeline_mode<synchronous>, transform_indices = @transform_2, window_bounds = array<i64: 128, 128>}, {pipeline_mode = #tpu.pipeline_mode<synchronous>, transform_indices = @transform_3, window_bounds = array<i64: 128, 1>}, {pipeline_mode = #tpu.pipeline_mode<synchronous>, transform_indices = @transform_4, window_bounds = array<i64: 128, 128>}, {pipeline_mode = #tpu.pipeline_mode<synchronous>, transform_indices = @transform_5, window_bounds = array<i64: 128, 1>}, {pipeline_mode = #tpu.pipeline_mode<synchronous>, transform_indices = @transform_6, window_bounds = array<i64: 2, 128>}, {transform_indices = @transform_7, window_bounds = array<i64: 1, 2, 384>}]} {
    %c0 = arith.constant 0 : index
    %c0_0 = arith.constant 0 : index
    %c0_1 = arith.constant 0 : index
    %0 = vector.load %arg2[%c0, %c0_0, %c0_1] : memref<1x384x128xf32, #tpu.memory_space<vmem>>, vector<1x384x128xf32>
    %1 = vector.shape_cast %0 : vector<1x384x128xf32> to vector<384x128xf32>
    %2 = arith.truncf %1 : vector<384x128xf32> to vector<384x128xbf16>
    %c0_2 = arith.constant 0 : index
    %c0_3 = arith.constant 0 : index
    %3 = vector.load %arg4[%c0_2, %c0_3] : memref<128x128xbf16, #tpu.memory_space<vmem>>, vector<128x128xbf16>
    %cst = arith.constant dense<0.000000e+00> : vector<128x384xf32>
    %4 = tpu.matmul %3, %2, %cst {dimension_numbers = #tpu.dot_dimension_numbers<[1], [1], [0], [0], [0, 0, 1, 0], [], []>} : vector<128x128xbf16>, vector<384x128xbf16>, vector<128x384xf32> -> vector<128x384xf32>
    %c0_4 = arith.constant 0 : index
    %c0_5 = arith.constant 0 : index
    %5 = vector.load %arg5[%c0_4, %c0_5] : memref<128x1xf32, #tpu.memory_space<vmem>>, vector<128x1xf32>
    %6 = vector.broadcast %5 : vector<128x1xf32> to vector<128x384xf32>
    %7 = arith.addf %4, %6 : vector<128x384xf32>
    %cst_6 = arith.constant 0.000000e+00 : f32
    %8 = vector.broadcast %cst_6 : f32 to vector<128x384xf32>
    %9 = arith.maximumf %7, %8 : vector<128x384xf32>
    %c0_7 = arith.constant 0 : index
    %c0_8 = arith.constant 0 : index
    %c0_9 = arith.constant 0 : index
    %10 = vector.load %arg3[%c0_7, %c0_8, %c0_9] : memref<1x128x1xf32, #tpu.memory_space<vmem>>, vector<1x128x1xf32>
    %11 = vector.shape_cast %10 : vector<1x128x1xf32> to vector<128x1xf32>
    %12 = vector.broadcast %11 : vector<128x1xf32> to vector<128x384xf32>
    %13 = arith.addf %9, %12 : vector<128x384xf32>
    %14 = arith.truncf %13 : vector<128x384xf32> to vector<128x384xbf16>
    %c0_10 = arith.constant 0 : index
    %c0_11 = arith.constant 0 : index
    %15 = vector.load %arg6[%c0_10, %c0_11] : memref<128x128xbf16, #tpu.memory_space<vmem>>, vector<128x128xbf16>
    %cst_12 = arith.constant dense<0.000000e+00> : vector<128x384xf32>
    %16 = tpu.matmul %15, %14, %cst_12 {dimension_numbers = #tpu.dot_dimension_numbers<[1], [0], [0], [1], [0, 0, 1, 1], [], []>} : vector<128x128xbf16>, vector<128x384xbf16>, vector<128x384xf32> -> vector<128x384xf32>
    %c0_13 = arith.constant 0 : index
    %c0_14 = arith.constant 0 : index
    %17 = vector.load %arg7[%c0_13, %c0_14] : memref<128x1xf32, #tpu.memory_space<vmem>>, vector<128x1xf32>
    %18 = vector.broadcast %17 : vector<128x1xf32> to vector<128x384xf32>
    %19 = arith.addf %16, %18 : vector<128x384xf32>
    %cst_15 = arith.constant 0.000000e+00 : f32
    %20 = vector.broadcast %cst_15 : f32 to vector<128x384xf32>
    %21 = arith.maximumf %19, %20 : vector<128x384xf32>
    %22 = arith.truncf %21 : vector<128x384xf32> to vector<128x384xbf16>
    %c0_16 = arith.constant 0 : index
    %c0_17 = arith.constant 0 : index
    %23 = vector.load %arg8[%c0_16, %c0_17] : memref<2x128xbf16, #tpu.memory_space<vmem>>, vector<2x128xbf16>
    %cst_18 = arith.constant dense<0.000000e+00> : vector<2x384xf32>
    %24 = tpu.matmul %23, %22, %cst_18 {dimension_numbers = #tpu.dot_dimension_numbers<[1], [0], [0], [1], [0, 0, 1, 1], [], []>} : vector<2x128xbf16>, vector<128x384xbf16>, vector<2x384xf32> -> vector<2x384xf32>
    %25 = vector.extract_strided_slice %24 {offsets = [0, 0], sizes = [1, 384], strides = [1, 1]} : vector<2x384xf32> to vector<1x384xf32>
    %26 = vector.extract_strided_slice %24 {offsets = [1, 0], sizes = [1, 384], strides = [1, 1]} : vector<2x384xf32> to vector<1x384xf32>
    %27 = arith.subf %26, %25 : vector<1x384xf32>
    %cst_19 = arith.constant 0.000000e+00 : f32
    %28 = vector.broadcast %cst_19 : f32 to vector<1x384xf32>
    %29 = arith.maximumf %27, %28 : vector<1x384xf32>
    %30 = arith.addf %25, %29 : vector<1x384xf32>
    %31 = math.absf %27 : vector<1x384xf32>
    %cst_20 = arith.constant 0.000000e+00 : f32
    %32 = vector.broadcast %cst_20 : f32 to vector<1x384xf32>
    %33 = arith.subf %32, %31 : vector<1x384xf32>
    %34 = math.exp %33 : vector<1x384xf32>
    %cst_21 = arith.constant 1.000000e+00 : f32
    %35 = vector.broadcast %cst_21 : f32 to vector<1x384xf32>
    %36 = arith.addf %35, %34 : vector<1x384xf32>
    %37 = math.log %36 : vector<1x384xf32>
    %38 = arith.addf %30, %37 : vector<1x384xf32>
    %39 = vector.broadcast %38 : vector<1x384xf32> to vector<2x384xf32>
    %40 = arith.subf %24, %39 : vector<2x384xf32>
    %c0_22 = arith.constant 0 : index
    %c0_23 = arith.constant 0 : index
    %c0_24 = arith.constant 0 : index
    %41 = vector.load %arg9[%c0_22, %c0_23, %c0_24] : memref<1x2x384xf32, #tpu.memory_space<vmem>>, vector<1x2x384xf32>
    %42 = vector.shape_cast %41 : vector<1x2x384xf32> to vector<2x384xf32>
    %43 = vector.shape_cast %40 : vector<2x384xf32> to vector<1x2x384xf32>
    tpu.vector_store %arg9[%c0_22, %c0_23, %c0_24], %43 {strides = array<i32>} : memref<1x2x384xf32, #tpu.memory_space<vmem>>, vector<1x2x384xf32>,
    return
  }
  func.func @transform_0(%arg0: i32, %arg1: i32) -> (i32, i32, i32) {
    %c0_i32 = arith.constant 0 : i32
    %c0_i32_0 = arith.constant 0 : i32
    return %arg0, %arg1, %c0_i32 : i32, i32, i32
  }
  func.func @transform_1(%arg0: i32, %arg1: i32) -> (i32, i32, i32) {
    %c0_i32 = arith.constant 0 : i32
    %c0_i32_0 = arith.constant 0 : i32
    %c0_i32_1 = arith.constant 0 : i32
    return %arg0, %c0_i32, %c0_i32_0 : i32, i32, i32
  }
  func.func @transform_2(%arg0: i32, %arg1: i32) -> (i32, i32) {
    %c0_i32 = arith.constant 0 : i32
    %c0_i32_0 = arith.constant 0 : i32
    %c0_i32_1 = arith.constant 0 : i32
    return %c0_i32, %c0_i32_0 : i32, i32
  }
  func.func @transform_3(%arg0: i32, %arg1: i32) -> (i32, i32) {
    %c0_i32 = arith.constant 0 : i32
    %c0_i32_0 = arith.constant 0 : i32
    %c0_i32_1 = arith.constant 0 : i32
    return %c0_i32, %c0_i32_0 : i32, i32
  }
  func.func @transform_4(%arg0: i32, %arg1: i32) -> (i32, i32) {
    %c0_i32 = arith.constant 0 : i32
    %c0_i32_0 = arith.constant 0 : i32
    %c0_i32_1 = arith.constant 0 : i32
    return %c0_i32, %c0_i32_0 : i32, i32
  }
  func.func @transform_5(%arg0: i32, %arg1: i32) -> (i32, i32) {
    %c0_i32 = arith.constant 0 : i32
    %c0_i32_0 = arith.constant 0 : i32
    %c0_i32_1 = arith.constant 0 : i32
    return %c0_i32, %c0_i32_0 : i32, i32
  }
  func.func @transform_6(%arg0: i32, %arg1: i32) -> (i32, i32) {
    %c0_i32 = arith.constant 0 : i32
    %c0_i32_0 = arith.constant 0 : i32
    %c0_i32_1 = arith.constant 0 : i32
    return %c0_i32, %c0_i32_0 : i32, i32
  }
  func.func @transform_7(%arg0: i32, %arg1: i32) -> (i32, i32, i32) {
    %c0_i32 = arith.constant 0 : i32
    %c0_i32_0 = arith.constant 0 : i32
    return %arg0, %c0_i32, %arg1 : i32, i32, i32
  }
}

</mosaic_0001>

<llo_original>
// kernel: _automark_forward.1
$region0: #{_automark_forward.1}
  #allocation0 [shape = 'u32[]', space=smem, size = 0x4, offset = 0x4, fixed_abs, tag = 'smem constant byte address 0x4 - core index']
  #allocation1 [shape = 'u32[72,128]{1,0:T(1,128)}', space=vmem, size = 0x9000, scoped, tag = 'internal scratch']
  %s0 = inlined_call_operand.vmem [shape: f32[2,384,128], index: 0, kind: input, shape index: {}]
  %s1 = inlined_call_operand.vmem [shape: f32[2,128,1], index: 1, kind: input, shape index: {}]
  %s2 = inlined_call_operand.vmem [shape: bf16[128,128], index: 2, kind: input, shape index: {}]
  %s3 = inlined_call_operand.vmem [shape: f32[128,1], index: 3, kind: input, shape index: {}]
  %s4 = inlined_call_operand.vmem [shape: bf16[128,128], index: 4, kind: input, shape index: {}]
  %s5 = inlined_call_operand.vmem [shape: f32[128,1], index: 5, kind: input, shape index: {}]
  %s6 = inlined_call_operand.vmem [shape: bf16[2,128], index: 6, kind: input, shape index: {}]
  %s7 = inlined_call_operand.hbm [shape: f32[2,2,384], index: 7, kind: output, shape index: {}]
  %s8 = sld [smem:[#allocation0]]
  $region61: #{_automark_forward.1} parent=0
    _
  %s10 = ssub.s32 1, %s8
  %s11 = scalar_select 0, %s10, %s8
  $region1: #{_automark_forward.1} parent=0
    #allocation2 [shape = 'u8[6144]{0}', space=vmem, size = 0x1800, scoped, tag = 'output window, operand 0']
    #allocation3 [shape = 's32[2]{0}', space=sflag, size = 0x8, scoped, tag = 'scoped memory for _automark_forward.1']
    %12 = vsyncpa [#allocation3], 0
    %s13 = scalar_lea.sflag [#allocation3], 1
    %14 = vsyncpa %s13, 0
    loop: start=0, step=1, limit=4
    $region2: #{_automark_forward.1} parent=1 // loop_pre_header
      _
    $region3: #{_automark_forward.1} parent=1 // loop_header
      %s16 = sphi 0, %s20
      %p17 = scmp.ge.s32.totalorder %s16, 4
      %s23 = sphi 0, %s35
      %s24 = sphi 0, %s31
      %s25 = sphi 0, %s23
      %s26 = sphi 0, %s24
      %s27 = sphi 0, %s25
      %s28 = sphi 0, %s26
      %s40 = sphi 0, %s42
      %s43 = sphi 0, %s40
      %s44 = sphi 0, %s43
      %s60 = sphi 0, %s44
      %s66 = sphi 0, %s68
      %s69 = sphi 0, %s66
      %s70 = sphi 0, %s69
      %s86 = sphi 0, %s70
      %s90 = sphi 0, %s90
      %s92 = sphi 0, %s90
      %s93 = sphi 0, %s92
      %s107 = sphi 0, %s93
      %s111 = sphi 0, %s111
      %s113 = sphi 0, %s111
      %s114 = sphi 0, %s113
      %s128 = sphi 0, %s114
      %s132 = sphi 0, %s132
      %s134 = sphi 0, %s132
      %s135 = sphi 0, %s134
      %s149 = sphi 0, %s135
      %s153 = sphi 0, %s153
      %s155 = sphi 0, %s153
      %s156 = sphi 0, %s155
      %s170 = sphi 0, %s156
      %s174 = sphi 0, %s174
      %s176 = sphi 0, %s174
      %s177 = sphi 0, %s176
      %s191 = sphi 0, %s177
      %s199 = sphi 0, %s201
      %s202 = sphi 0, %s199
      %s203 = sphi 0, %s202
      %s219 = sphi 0, %s203
    $region4: #{_automark_forward.1} parent=1 // loop_header_branch
      %19 = sbr.rel (%p17) target = $region8
    $region5: #{_automark_forward.1} parent=1 // loop_body
      %s21 = ssub.s32 %s16, 1
      %s22 = ssub.s32 %s16, 2
      %s29 = sadd.s32 1, %s24
      %p30 = scmp.ge.s32.totalorder %s29, 1
      %s31 = scalar_select %p30, 0, %s29
      %s32 = sadd.s32 1, %s23
      %s33 = scalar_select %p30, %s32, %s23
      %p34 = scmp.ge.s32.totalorder %s33, 2
      %s35 = scalar_select %p34, 0, %s33
      %s36 = ssub.s32 %s23, %s35
      %s37 = ssub.s32 %s24, %s31
      %s38 = sor.u32 %s36, %s37
      %p39 = scmp.eq.s32.totalorder %s38, 0
      %s41 = sadd.s32 %s40, 1
      %s42 = scalar_select %p39, %s40, %s41
      %p45 = pneg %p39
      %p46 = scmp.eq.s32.totalorder %s16, 1
      %p47 = por %p45, %p46
      %p48 = scmp.ne.s32.totalorder %s40, %s43
      %p49 = scmp.eq.s32.totalorder %s16, 0
      %p50 = por %p48, %p49
      %p51 = scmp.ne.s32.totalorder %s40, %s43
      %p52 = scmp.eq.s32.totalorder %s21, 1
      %p53 = por %p51, %p52
      %p54 = scmp.ne.s32.totalorder %s43, %s44
      %p55 = scmp.eq.s32.totalorder %s21, 0
      %p56 = por %p54, %p55
      %p57 = scmp.ne.s32.totalorder %s43, %s44
      %p58 = scmp.eq.s32.totalorder %s22, 1
      %p59 = por %p57, %p58
      %p61 = scmp.ne.s32.totalorder %s44, %s60
      %p62 = scmp.eq.s32.totalorder %s22, 0
      %p63 = por %p61, %p62
      %s64 = ssub.s32 %s23, %s35
      %p65 = scmp.eq.s32.totalorder %s64, 0
      %s67 = sadd.s32 %s66, 1
      %s68 = scalar_select %p65, %s66, %s67
      %p71 = pneg %p65
      %p72 = scmp.eq.s32.totalorder %s16, 1
      %p73 = por %p71, %p72
      %p74 = scmp.ne.s32.totalorder %s66, %s69
      %p75 = scmp.eq.s32.totalorder %s16, 0
      %p76 = por %p74, %p75
      %p77 = scmp.ne.s32.totalorder %s66, %s69
      %p78 = scmp.eq.s32.totalorder %s21, 1
      %p79 = por %p77, %p78
      %p80 = scmp.ne.s32.totalorder %s69, %s70
      %p81 = scmp.eq.s32.totalorder %s21, 0
      %p82 = por %p80, %p81
      %p83 = scmp.ne.s32.totalorder %s69, %s70
      %p84 = scmp.eq.s32.totalorder %s22, 1
      %p85 = por %p83, %p84
      %p87 = scmp.ne.s32.totalorder %s70, %s86
      %p88 = scmp.eq.s32.totalorder %s22, 0
      %p89 = por %p87, %p88
      %s91 = sadd.s32 %s90, 1
      %p94 = scmp.eq.s32.totalorder %s16, 1
      %p95 = scmp.ne.s32.totalorder %s90, %s92
      %p96 = scmp.eq.s32.totalorder %s16, 0
      %p97 = por %p95, %p96
      %p98 = scmp.ne.s32.totalorder %s90, %s92
      %p99 = scmp.eq.s32.totalorder %s21, 1
      %p100 = por %p98, %p99
      %p101 = scmp.ne.s32.totalorder %s92, %s93
      %p102 = scmp.eq.s32.totalorder %s21, 0
      %p103 = por %p101, %p102
      %p104 = scmp.ne.s32.totalorder %s92, %s93
      %p105 = scmp.eq.s32.totalorder %s22, 1
      %p106 = por %p104, %p105
      %p108 = scmp.ne.s32.totalorder %s93, %s107
      %p109 = scmp.eq.s32.totalorder %s22, 0
      %p110 = por %p108, %p109
      %s112 = sadd.s32 %s111, 1
      %p115 = scmp.eq.s32.totalorder %s16, 1
      %p116 = scmp.ne.s32.totalorder %s111, %s113
      %p117 = scmp.eq.s32.totalorder %s16, 0
      %p118 = por %p116, %p117
      %p119 = scmp.ne.s32.totalorder %s111, %s113
      %p120 = scmp.eq.s32.totalorder %s21, 1
      %p121 = por %p119, %p120
      %p122 = scmp.ne.s32.totalorder %s113, %s114
      %p123 = scmp.eq.s32.totalorder %s21, 0
      %p124 = por %p122, %p123
      %p125 = scmp.ne.s32.totalorder %s113, %s114
      %p126 = scmp.eq.s32.totalorder %s22, 1
      %p127 = por %p125, %p126
      %p129 = scmp.ne.s32.totalorder %s114, %s128
      %p130 = scmp.eq.s32.totalorder %s22, 0
      %p131 = por %p129, %p130
      %s133 = sadd.s32 %s132, 1
      %p136 = scmp.eq.s32.totalorder %s16, 1
      %p137 = scmp.ne.s32.totalorder %s132, %s134
      %p138 = scmp.eq.s32.totalorder %s16, 0
      %p139 = por %p137, %p138
      %p140 = scmp.ne.s32.totalorder %s132, %s134
      %p141 = scmp.eq.s32.totalorder %s21, 1
      %p142 = por %p140, %p141
      %p143 = scmp.ne.s32.totalorder %s134, %s135
      %p144 = scmp.eq.s32.totalorder %s21, 0
      %p145 = por %p143, %p144
      %p146 = scmp.ne.s32.totalorder %s134, %s135
      %p147 = scmp.eq.s32.totalorder %s22, 1
      %p148 = por %p146, %p147
      %p150 = scmp.ne.s32.totalorder %s135, %s149
      %p151 = scmp.eq.s32.totalorder %s22, 0
      %p152 = por %p150, %p151
      %s154 = sadd.s32 %s153, 1
      %p157 = scmp.eq.s32.totalorder %s16, 1
      %p158 = scmp.ne.s32.totalorder %s153, %s155
      %p159 = scmp.eq.s32.totalorder %s16, 0
      %p160 = por %p158, %p159
      %p161 = scmp.ne.s32.totalorder %s153, %s155
      %p162 = scmp.eq.s32.totalorder %s21, 1
      %p163 = por %p161, %p162
      %p164 = scmp.ne.s32.totalorder %s155, %s156
      %p165 = scmp.eq.s32.totalorder %s21, 0
      %p166 = por %p164, %p165
      %p167 = scmp.ne.s32.totalorder %s155, %s156
      %p168 = scmp.eq.s32.totalorder %s22, 1
      %p169 = por %p167, %p168
      %p171 = scmp.ne.s32.totalorder %s156, %s170
      %p172 = scmp.eq.s32.totalorder %s22, 0
      %p173 = por %p171, %p172
      %s175 = sadd.s32 %s174, 1
      %p178 = scmp.eq.s32.totalorder %s16, 1
      %p179 = scmp.ne.s32.totalorder %s174, %s176
      %p180 = scmp.eq.s32.totalorder %s16, 0
      %p181 = por %p179, %p180
      %p182 = scmp.ne.s32.totalorder %s174, %s176
      %p183 = scmp.eq.s32.totalorder %s21, 1
      %p184 = por %p182, %p183
      %p185 = scmp.ne.s32.totalorder %s176, %s177
      %p186 = scmp.eq.s32.totalorder %s21, 0
      %p187 = por %p185, %p186
      %p188 = scmp.ne.s32.totalorder %s176, %s177
      %p189 = scmp.eq.s32.totalorder %s22, 1
      %p190 = por %p188, %p189
      %p192 = scmp.ne.s32.totalorder %s177, %s191
      %p193 = scmp.eq.s32.totalorder %s22, 0
      %p194 = por %p192, %p193
      %s195 = ssub.s32 %s23, %s35
      %s196 = ssub.s32 %s24, %s31
      %s197 = sor.u32 %s195, %s196
      %p198 = scmp.eq.s32.totalorder %s197, 0
      %s200 = sadd.s32 %s199, 1
      %s201 = scalar_select %p198, %s199, %s200
      %p204 = pneg %p198
      %p205 = scmp.eq.s32.totalorder %s16, 1
      %p206 = por %p204, %p205
      %p207 = scmp.ne.s32.totalorder %s199, %s202
      %p208 = scmp.eq.s32.totalorder %s16, 0
      %p209 = por %p207, %p208
      %p210 = scmp.ne.s32.totalorder %s199, %s202
      %p211 = scmp.eq.s32.totalorder %s21, 1
      %p212 = por %p210, %p211
      %p213 = scmp.ne.s32.totalorder %s202, %s203
      %p214 = scmp.eq.s32.totalorder %s21, 0
      %p215 = por %p213, %p214
      %p216 = scmp.ne.s32.totalorder %s202, %s203
      %p217 = scmp.eq.s32.totalorder %s22, 1
      %p218 = por %p216, %p217
      %p220 = scmp.ne.s32.totalorder %s203, %s219
      %p221 = scmp.eq.s32.totalorder %s22, 0
      %p222 = por %p220, %p221
      %p223 = scmp.le.s32.totalorder 1, %s16
      %p224 = scmp.lt.s32.totalorder %s16, 3
      %p225 = pnand %p223, %p224
      %p226 = pneg %p225
      // Predicated region
      $region9: #{_automark_forward.1} parent=5 // pred_check
        _
      $region10: #{_automark_forward.1} parent=5 // pred_check_branch
        %228 = sbr.rel (%p225) target = $region12
      $region11: #{_automark_forward.1} parent=5 // pred_region
        %s229 = ssub.s32 %s16, 1
        // Predicated region
        $region13: #{_automark_forward.1} parent=11 // pred_check
          %p230 = pneg %p103
        $region14: #{_automark_forward.1} parent=11 // pred_check_branch
          %232 = sbr.rel (%p230) target = $region16
        $region15: #{_automark_forward.1} parent=11 // pred_region
          _
        $region16: #{_automark_forward.1} parent=11 // pred_fallthru
          _
        // Predicated region
        $region17: #{_automark_forward.1} parent=11 // pred_check
          %p233 = pneg %p124
        $region18: #{_automark_forward.1} parent=11 // pred_check_branch
          %235 = sbr.rel (%p233) target = $region20
        $region19: #{_automark_forward.1} parent=11 // pred_region
          _
        $region20: #{_automark_forward.1} parent=11 // pred_fallthru
          _
        // Predicated region
        $region21: #{_automark_forward.1} parent=11 // pred_check
          %p236 = pneg %p145
        $region22: #{_automark_forward.1} parent=11 // pred_check_branch
          %238 = sbr.rel (%p236) target = $region24
        $region23: #{_automark_forward.1} parent=11 // pred_region
          _
        $region24: #{_automark_forward.1} parent=11 // pred_fallthru
          _
        // Predicated region
        $region25: #{_automark_forward.1} parent=11 // pred_check
          %p239 = pneg %p166
        $region26: #{_automark_forward.1} parent=11 // pred_check_branch
          %241 = sbr.rel (%p239) target = $region28
        $region27: #{_automark_forward.1} parent=11 // pred_region
          _
        $region28: #{_automark_forward.1} parent=11 // pred_fallthru
          _
        // Predicated region
        $region29: #{_automark_forward.1} parent=11 // pred_check
          %p242 = pneg %p187
        $region30: #{_automark_forward.1} parent=11 // pred_check_branch
          %244 = sbr.rel (%p242) target = $region32
        $region31: #{_automark_forward.1} parent=11 // pred_region
          _
        $region32: #{_automark_forward.1} parent=11 // pred_fallthru
          _
      $region12: #{_automark_forward.1} parent=5 // pred_fallthru
        _
      %p245 = scmp.lt.s32.totalorder %s16, 2
      // Predicated region
      $region33: #{_automark_forward.1} parent=5 // pred_check
        %p246 = pneg %p245
      $region34: #{_automark_forward.1} parent=5 // pred_check_branch
        %248 = sbr.rel (%p246) target = $region36
      $region35: #{_automark_forward.1} parent=5 // pred_region
        // Predicated region
        $region37: #{_automark_forward.1} parent=35 // pred_check
          %p249 = pneg %p50
        $region38: #{_automark_forward.1} parent=35 // pred_check_branch
          %251 = sbr.rel (%p249) target = $region40
        $region39: #{_automark_forward.1} parent=35 // pred_region
          %s252 = smul.u32 48, %s24
          %p253 = scmp.lt.s32.totalorder %s23, 1
          %s254 = scalar_select %p253, %s23, 1
          %p255 = scmp.lt.s32.totalorder %s252, 47
          %s256 = scalar_select %p255, %s252, 47
          %s257 = smul.addr %s254, 48
          %s258 = sadd.s32 %s256, %s257
          %s259 = smul.addr %s258, 8
          %s260 = scalar_lea.vmem %s0, %s259
          %s261 = smul.u32 48, %s24
        $region40: #{_automark_forward.1} parent=35 // pred_fallthru
          _
        // Predicated region
        $region41: #{_automark_forward.1} parent=35 // pred_check
          %p262 = pneg %p76
        $region42: #{_automark_forward.1} parent=35 // pred_check_branch
          %264 = sbr.rel (%p262) target = $region44
        $region43: #{_automark_forward.1} parent=35 // pred_region
          %p265 = scmp.lt.s32.totalorder %s23, 1
          %s266 = scalar_select %p265, %s23, 1
          %s267 = smul.addr %s266, 16
          %s268 = smul.addr %s267, 8
          %s269 = scalar_lea.vmem %s1, %s268
        $region44: #{_automark_forward.1} parent=35 // pred_fallthru
          _
      $region36: #{_automark_forward.1} parent=5 // pred_fallthru
        _
      %p270 = scmp.le.s32.totalorder 1, %s16
      %p271 = scmp.lt.s32.totalorder %s16, 3
      %p272 = pnand %p270, %p271
      %p273 = pneg %p272
      // Predicated region
      $region45: #{_automark_forward.1} parent=5 // pred_check
        _
      $region46: #{_automark_forward.1} parent=5 // pred_check_branch
        %275 = sbr.rel (%p272) target = $region48
      $region47: #{_automark_forward.1} parent=5 // pred_region
        %s276 = ssub.s32 %s16, 1
        %s277 = smul.u32 48, %s26
        %p278 = scmp.lt.s32.totalorder %s25, 1
        %s279 = scalar_select %p278, %s25, 1
        %p280 = scmp.lt.s32.totalorder %s277, 47
        %s281 = scalar_select %p280, %s277, 47
        %s282 = smul.addr %s279, 48
        %s283 = sadd.s32 %s281, %s282
        %s284 = smul.addr %s283, 8
        %s285 = scalar_lea.vmem %s0, %s284
        %p286 = pneg %p56
        %p287 = pneg %p53
        %p288 = scmp.lt.s32.totalorder %s25, 1
        %s289 = scalar_select %p288, %s25, 1
        %s290 = smul.addr %s289, 16
        %s291 = smul.addr %s290, 8
        %s292 = scalar_lea.vmem %s1, %s291
        %p293 = pneg %p82
        %p294 = pneg %p79
        %p295 = pneg %p103
        %p296 = pneg %p100
        %p297 = pneg %p124
        %p298 = pneg %p121
        %p299 = pneg %p145
        %p300 = pneg %p142
        %p301 = pneg %p166
        %p302 = pneg %p163
        %p303 = pneg %p187
        %p304 = pneg %p184
        %p305 = pneg %p215
        %p306 = pneg %p212
        %s307 = sand.u32 %s202, 1
        %s308 = scalar_lea.sflag [#allocation3], %s307
        %s309 = sand.u32 %s202, 1
        %s310 = smul.addr %s309, 6
        %s311 = scalar_lea.vmem [#allocation2], %s310
        %s312 = smul.u32 48, %s26
        %p313 = scmp.lt.s32.totalorder %s25, 1
        %s314 = scalar_select %p313, %s25, 1
        %p315 = scmp.lt.s32.totalorder %s312, 47
        %s316 = scalar_select %p315, %s312, 47
        %s317 = smul.addr %s314, 48
        %s318 = sadd.s32 %s316, %s317
        %s319 = smul.addr %s318, 8
        %s320 = scalar_lea.vmem %s0, %s319
        %s321 = smul.u32 48, %s26
        %p322 = scmp.lt.s32.totalorder %s25, 1
        %s323 = scalar_select %p322, %s25, 1
        %s324 = smul.addr %s323, 16
        %s325 = smul.addr %s324, 8
        %s326 = scalar_lea.vmem %s1, %s325
        %s327 = smul.u32 3, %s26
        %v328 = vld [vmem:[%s320] sm:$0xff]
        %v329 = vld [vmem:[%s320 + $0x8] sm:$0xff]
        %v330 = vld [vmem:[%s320 + $0x10] sm:$0xff]
        %v331 = vld [vmem:[%s320 + $0x18] sm:$0xff]
        %v332 = vld [vmem:[%s320 + $0x20] sm:$0xff]
        %v333 = vld [vmem:[%s320 + $0x28] sm:$0xff]
        %v334 = vld [vmem:[%s320 + $0x30] sm:$0xff]
        %v335 = vld [vmem:[%s320 + $0x38] sm:$0xff]
        %v336 = vld [vmem:[%s320 + $0x40] sm:$0xff]
        %v337 = vld [vmem:[%s320 + $0x48] sm:$0xff]
        %v338 = vld [vmem:[%s320 + $0x50] sm:$0xff]
        %v339 = vld [vmem:[%s320 + $0x58] sm:$0xff]
        %v340 = vld [vmem:[%s320 + $0x60] sm:$0xff]
        %v341 = vld [vmem:[%s320 + $0x68] sm:$0xff]
        %v342 = vld [vmem:[%s320 + $0x70] sm:$0xff]
        %v343 = vld [vmem:[%s320 + $0x78] sm:$0xff]
        %v344 = vld [vmem:[%s320 + $0x80] sm:$0xff]
        %v345 = vld [vmem:[%s320 + $0x88] sm:$0xff]
        %v346 = vld [vmem:[%s320 + $0x90] sm:$0xff]
        %v347 = vld [vmem:[%s320 + $0x98] sm:$0xff]
        %v348 = vld [vmem:[%s320 + $0xa0] sm:$0xff]
        %v349 = vld [vmem:[%s320 + $0xa8] sm:$0xff]
        %v350 = vld [vmem:[%s320 + $0xb0] sm:$0xff]
        %v351 = vld [vmem:[%s320 + $0xb8] sm:$0xff]
        %v352 = vld [vmem:[%s320 + $0xc0] sm:$0xff]
        %v353 = vld [vmem:[%s320 + $0xc8] sm:$0xff]
        %v354 = vld [vmem:[%s320 + $0xd0] sm:$0xff]
        %v355 = vld [vmem:[%s320 + $0xd8] sm:$0xff]
        %v356 = vld [vmem:[%s320 + $0xe0] sm:$0xff]
        %v357 = vld [vmem:[%s320 + $0xe8] sm:$0xff]
        %v358 = vld [vmem:[%s320 + $0xf0] sm:$0xff]
        %v359 = vld [vmem:[%s320 + $0xf8] sm:$0xff]
        %v360 = vld [vmem:[%s320 + $0x100] sm:$0xff]
        %v361 = vld [vmem:[%s320 + $0x108] sm:$0xff]
        %v362 = vld [vmem:[%s320 + $0x110] sm:$0xff]
        %v363 = vld [vmem:[%s320 + $0x118] sm:$0xff]
        %v364 = vld [vmem:[%s320 + $0x120] sm:$0xff]
        %v365 = vld [vmem:[%s320 + $0x128] sm:$0xff]
        %v366 = vld [vmem:[%s320 + $0x130] sm:$0xff]
        %v367 = vld [vmem:[%s320 + $0x138] sm:$0xff]
        %v368 = vld [vmem:[%s320 + $0x140] sm:$0xff]
        %v369 = vld [vmem:[%s320 + $0x148] sm:$0xff]
        %v370 = vld [vmem:[%s320 + $0x150] sm:$0xff]
        %v371 = vld [vmem:[%s320 + $0x158] sm:$0xff]
        %v372 = vld [vmem:[%s320 + $0x160] sm:$0xff]
        %v373 = vld [vmem:[%s320 + $0x168] sm:$0xff]
        %v374 = vld [vmem:[%s320 + $0x170] sm:$0xff]
        %v375 = vld [vmem:[%s320 + $0x178] sm:$0xff]
        %v376 = vpack.c.bf16 %v329, %v328
        %v377 = vpack.c.bf16 %v331, %v330
        %v378 = vpack.c.bf16 %v333, %v332
        %v379 = vpack.c.bf16 %v335, %v334
        %v380 = vpack.c.bf16 %v337, %v336
        %v381 = vpack.c.bf16 %v339, %v338
        %v382 = vpack.c.bf16 %v341, %v340
        %v383 = vpack.c.bf16 %v343, %v342
        %v384 = vpack.c.bf16 %v345, %v344
        %v385 = vpack.c.bf16 %v347, %v346
        %v386 = vpack.c.bf16 %v349, %v348
        %v387 = vpack.c.bf16 %v351, %v350
        %v388 = vpack.c.bf16 %v353, %v352
        %v389 = vpack.c.bf16 %v355, %v354
        %v390 = vpack.c.bf16 %v357, %v356
        %v391 = vpack.c.bf16 %v359, %v358
        %v392 = vpack.c.bf16 %v361, %v360
        %v393 = vpack.c.bf16 %v363, %v362
        %v394 = vpack.c.bf16 %v365, %v364
        %v395 = vpack.c.bf16 %v367, %v366
        %v396 = vpack.c.bf16 %v369, %v368
        %v397 = vpack.c.bf16 %v371, %v370
        %v398 = vpack.c.bf16 %v373, %v372
        %v399 = vpack.c.bf16 %v375, %v374
        %v400 = vld [vmem:[%s2] sm:$0xf]
        %v401 = vld [vmem:[%s2 + $0x4] sm:$0xf]
        %v402 = vld [vmem:[%s2 + $0x8] sm:$0xf]
        %v403 = vld [vmem:[%s2 + $0xc] sm:$0xf]
        %v404 = vld [vmem:[%s2 + $0x10] sm:$0xf]
        %v405 = vld [vmem:[%s2 + $0x14] sm:$0xf]
        %v406 = vld [vmem:[%s2 + $0x18] sm:$0xf]
        %v407 = vld [vmem:[%s2 + $0x1c] sm:$0xf]
        %v408 = vld [vmem:[%s2 + $0x20] sm:$0xf]
        %v409 = vld [vmem:[%s2 + $0x24] sm:$0xf]
        %v410 = vld [vmem:[%s2 + $0x28] sm:$0xf]
        %v411 = vld [vmem:[%s2 + $0x2c] sm:$0xf]
        %v412 = vld [vmem:[%s2 + $0x30] sm:$0xf]
        %v413 = vld [vmem:[%s2 + $0x34] sm:$0xf]
        %v414 = vld [vmem:[%s2 + $0x38] sm:$0xf]
        %v415 = vld [vmem:[%s2 + $0x3c] sm:$0xf]
        %v416 = vld [vmem:[%s3] sm:$0xff]
        %v417 = vld [vmem:[%s3 + $0x8] sm:$0xff]
        %v418 = vld [vmem:[%s3 + $0x10] sm:$0xff]
        %v419 = vld [vmem:[%s3 + $0x18] sm:$0xff]
        %v420 = vld [vmem:[%s3 + $0x20] sm:$0xff]
        %v421 = vld [vmem:[%s3 + $0x28] sm:$0xff]
        %v422 = vld [vmem:[%s3 + $0x30] sm:$0xff]
        %v423 = vld [vmem:[%s3 + $0x38] sm:$0xff]
        %v424 = vld [vmem:[%s3 + $0x40] sm:$0xff]
        %v425 = vld [vmem:[%s3 + $0x48] sm:$0xff]
        %v426 = vld [vmem:[%s3 + $0x50] sm:$0xff]
        %v427 = vld [vmem:[%s3 + $0x58] sm:$0xff]
        %v428 = vld [vmem:[%s3 + $0x60] sm:$0xff]
        %v429 = vld [vmem:[%s3 + $0x68] sm:$0xff]
        %v430 = vld [vmem:[%s3 + $0x70] sm:$0xff]
        %v431 = vld [vmem:[%s3 + $0x78] sm:$0xff]
        %433 = vset.pattern.permute.xlu0 0
        %434 = vperm.xlu0 %433, %v416
        %v435 = vpop.permute.xlu0 %434
        %438 = vset.pattern.permute.xlu0 0
        %439 = vperm.xlu0 %438, %v417
        %v440 = vpop.permute.xlu0 %439
        %443 = vset.pattern.permute.xlu0 0
        %444 = vperm.xlu0 %443, %v418
        %v445 = vpop.permute.xlu0 %444
        %448 = vset.pattern.permute.xlu0 0
        %449 = vperm.xlu0 %448, %v419
        %v450 = vpop.permute.xlu0 %449
        %453 = vset.pattern.permute.xlu0 0
        %454 = vperm.xlu0 %453, %v420
        %v455 = vpop.permute.xlu0 %454
        %458 = vset.pattern.permute.xlu0 0
        %459 = vperm.xlu0 %458, %v421
        %v460 = vpop.permute.xlu0 %459
        %463 = vset.pattern.permute.xlu0 0
        %464 = vperm.xlu0 %463, %v422
        %v465 = vpop.permute.xlu0 %464
        %468 = vset.pattern.permute.xlu0 0
        %469 = vperm.xlu0 %468, %v423
        %v470 = vpop.permute.xlu0 %469
        %473 = vset.pattern.permute.xlu0 0
        %474 = vperm.xlu0 %473, %v424
        %v475 = vpop.permute.xlu0 %474
        %478 = vset.pattern.permute.xlu0 0
        %479 = vperm.xlu0 %478, %v425
        %v480 = vpop.permute.xlu0 %479
        %483 = vset.pattern.permute.xlu0 0
        %484 = vperm.xlu0 %483, %v426
        %v485 = vpop.permute.xlu0 %484
        %488 = vset.pattern.permute.xlu0 0
        %489 = vperm.xlu0 %488, %v427
        %v490 = vpop.permute.xlu0 %489
        %493 = vset.pattern.permute.xlu0 0
        %494 = vperm.xlu0 %493, %v428
        %v495 = vpop.permute.xlu0 %494
        %498 = vset.pattern.permute.xlu0 0
        %499 = vperm.xlu0 %498, %v429
        %v500 = vpop.permute.xlu0 %499
        %503 = vset.pattern.permute.xlu0 0
        %504 = vperm.xlu0 %503, %v430
        %v505 = vpop.permute.xlu0 %504
        %508 = vset.pattern.permute.xlu0 0
        %509 = vperm.xlu0 %508, %v431
        %v510 = vpop.permute.xlu0 %509
        %v528 = vunpack.c.l.b16 %v400
        %v529 = vunpack.c.l.b16 %v401
        %v530 = vunpack.c.l.b16 %v402
        %v531 = vunpack.c.l.b16 %v403
        %v532 = vunpack.c.l.b16 %v404
        %v533 = vunpack.c.l.b16 %v405
        %v534 = vunpack.c.l.b16 %v406
        %v535 = vunpack.c.l.b16 %v407
        %v536 = vunpack.c.l.b16 %v408
        %v537 = vunpack.c.l.b16 %v409
        %v538 = vunpack.c.l.b16 %v410
        %v539 = vunpack.c.l.b16 %v411
        %v540 = vunpack.c.l.b16 %v412
        %v541 = vunpack.c.l.b16 %v413
        %v542 = vunpack.c.l.b16 %v414
        %v543 = vunpack.c.l.b16 %v415
        %v544 = vpack.c.b16 %v529, %v528
        %v545 = vpack.c.b16 %v531, %v530
        %v546 = vpack.c.b16 %v533, %v532
        %v547 = vpack.c.b16 %v535, %v534
        %v548 = vpack.c.b16 %v537, %v536
        %v549 = vpack.c.b16 %v539, %v538
        %v550 = vpack.c.b16 %v541, %v540
        %v551 = vpack.c.b16 %v543, %v542
        %560 = vmatpush.bf16.xpose.msra.mxu0 %v383
        %561 = vmatpush.bf16.xpose.msra.mxu0 %v382
        %562 = vmatpush.bf16.xpose.msra.mxu0 %v381
        %563 = vmatpush.bf16.xpose.msra.mxu0 %v380
        %564 = vmatpush.bf16.xpose.msra.mxu0 %v379
        %565 = vmatpush.bf16.xpose.msra.mxu0 %v378
        %566 = vmatpush.bf16.xpose.msra.mxu0 %v377
        %567 = vmatpush.bf16.xpose.msra.mxu0 %v376
        %568 = vmatmul.bf16.gmra.mxu0 %v544
        %v569 = vpop.f32.mrf.mxu0
        %v570 = vadd.f32 %v435, %v569
        %v571 = vpop.f32.mrf.mxu0
        %v572 = vadd.f32 %v440, %v571
        %573 = vmatmul.bf16.gmra.mxu0 %v545
        %v574 = vpop.f32.mrf.mxu0
        %v575 = vadd.f32 %v445, %v574
        %v576 = vpop.f32.mrf.mxu0
        %v577 = vadd.f32 %v450, %v576
        %578 = vmatmul.bf16.gmra.mxu0 %v546
        %v579 = vpop.f32.mrf.mxu0
        %v580 = vadd.f32 %v455, %v579
        %v581 = vpop.f32.mrf.mxu0
        %v582 = vadd.f32 %v460, %v581
        %583 = vmatmul.bf16.gmra.mxu0 %v547
        %v584 = vpop.f32.mrf.mxu0
        %v585 = vadd.f32 %v465, %v584
        %v586 = vpop.f32.mrf.mxu0
        %v587 = vadd.f32 %v470, %v586
        %588 = vmatmul.bf16.gmra.mxu0 %v548
        %v589 = vpop.f32.mrf.mxu0
        %v590 = vadd.f32 %v475, %v589
        %v591 = vpop.f32.mrf.mxu0
        %v592 = vadd.f32 %v480, %v591
        %593 = vmatmul.bf16.gmra.mxu0 %v549
        %v594 = vpop.f32.mrf.mxu0
        %v595 = vadd.f32 %v485, %v594
        %v596 = vpop.f32.mrf.mxu0
        %v597 = vadd.f32 %v490, %v596
        %598 = vmatmul.bf16.gmra.mxu0 %v550
        %v599 = vpop.f32.mrf.mxu0
        %v600 = vadd.f32 %v495, %v599
        %v601 = vpop.f32.mrf.mxu0
        %v602 = vadd.f32 %v500, %v601
        %603 = vmatmul.bf16.gmra.mxu0 %v551
        %v604 = vpop.f32.mrf.mxu0
        %v605 = vadd.f32 %v505, %v604
        %v606 = vpop.f32.mrf.mxu0
        %v607 = vadd.f32 %v510, %v606
        %608 = vdwg.mxu0
        %609 = vmatpush.bf16.xpose.msra.mxu0 %v391
        %610 = vmatpush.bf16.xpose.msra.mxu0 %v390
        %611 = vmatpush.bf16.xpose.msra.mxu0 %v389
        %612 = vmatpush.bf16.xpose.msra.mxu0 %v388
        %613 = vmatpush.bf16.xpose.msra.mxu0 %v387
        %614 = vmatpush.bf16.xpose.msra.mxu0 %v386
        %615 = vmatpush.bf16.xpose.msra.mxu0 %v385
        %616 = vmatpush.bf16.xpose.msra.mxu0 %v384
        %617 = vmatmul.bf16.gmra.mxu0 %v544
        %v618 = vpop.f32.mrf.mxu0
        %v619 = vadd.f32 %v435, %v618
        %v620 = vpop.f32.mrf.mxu0
        %v621 = vadd.f32 %v440, %v620
        %622 = vmatmul.bf16.gmra.mxu0 %v545
        %v623 = vpop.f32.mrf.mxu0
        %v624 = vadd.f32 %v445, %v623
        %v625 = vpop.f32.mrf.mxu0
        %v626 = vadd.f32 %v450, %v625
        %627 = vmatmul.bf16.gmra.mxu0 %v546
        %v628 = vpop.f32.mrf.mxu0
        %v629 = vadd.f32 %v455, %v628
        %v630 = vpop.f32.mrf.mxu0
        %v631 = vadd.f32 %v460, %v630
        %632 = vmatmul.bf16.gmra.mxu0 %v547
        %v633 = vpop.f32.mrf.mxu0
        %v634 = vadd.f32 %v465, %v633
        %v635 = vpop.f32.mrf.mxu0
        %v636 = vadd.f32 %v470, %v635
        %637 = vmatmul.bf16.gmra.mxu0 %v548
        %v638 = vpop.f32.mrf.mxu0
        %v639 = vadd.f32 %v475, %v638
        %v640 = vpop.f32.mrf.mxu0
        %v641 = vadd.f32 %v480, %v640
        %642 = vmatmul.bf16.gmra.mxu0 %v549
        %v643 = vpop.f32.mrf.mxu0
        %v644 = vadd.f32 %v485, %v643
        %v645 = vpop.f32.mrf.mxu0
        %v646 = vadd.f32 %v490, %v645
        %647 = vmatmul.bf16.gmra.mxu0 %v550
        %v648 = vpop.f32.mrf.mxu0
        %v649 = vadd.f32 %v495, %v648
        %v650 = vpop.f32.mrf.mxu0
        %v651 = vadd.f32 %v500, %v650
        %652 = vmatmul.bf16.gmra.mxu0 %v551
        %v653 = vpop.f32.mrf.mxu0
        %v654 = vadd.f32 %v505, %v653
        %v655 = vpop.f32.mrf.mxu0
        %v656 = vadd.f32 %v510, %v655
        %657 = vdwg.mxu0
        %658 = vmatpush.bf16.xpose.msra.mxu0 %v399
        %659 = vmatpush.bf16.xpose.msra.mxu0 %v398
        %660 = vmatpush.bf16.xpose.msra.mxu0 %v397
        %661 = vmatpush.bf16.xpose.msra.mxu0 %v396
        %662 = vmatpush.bf16.xpose.msra.mxu0 %v395
        %663 = vmatpush.bf16.xpose.msra.mxu0 %v394
        %664 = vmatpush.bf16.xpose.msra.mxu0 %v393
        %665 = vmatpush.bf16.xpose.msra.mxu0 %v392
        %666 = vmatmul.bf16.gmra.mxu0 %v544
        %v667 = vpop.f32.mrf.mxu0
        %v668 = vadd.f32 %v435, %v667
        %v669 = vpop.f32.mrf.mxu0
        %v670 = vadd.f32 %v440, %v669
        %671 = vmatmul.bf16.gmra.mxu0 %v545
        %v672 = vpop.f32.mrf.mxu0
        %v673 = vadd.f32 %v445, %v672
        %v674 = vpop.f32.mrf.mxu0
        %v675 = vadd.f32 %v450, %v674
        %676 = vmatmul.bf16.gmra.mxu0 %v546
        %v677 = vpop.f32.mrf.mxu0
        %v678 = vadd.f32 %v455, %v677
        %v679 = vpop.f32.mrf.mxu0
        %v680 = vadd.f32 %v460, %v679
        %681 = vmatmul.bf16.gmra.mxu0 %v547
        %v682 = vpop.f32.mrf.mxu0
        %v683 = vadd.f32 %v465, %v682
        %v684 = vpop.f32.mrf.mxu0
        %v685 = vadd.f32 %v470, %v684
        %686 = vmatmul.bf16.gmra.mxu0 %v548
        %v687 = vpop.f32.mrf.mxu0
        %v688 = vadd.f32 %v475, %v687
        %v689 = vpop.f32.mrf.mxu0
        %v690 = vadd.f32 %v480, %v689
        %691 = vmatmul.bf16.gmra.mxu0 %v549
        %v692 = vpop.f32.mrf.mxu0
        %v693 = vadd.f32 %v485, %v692
        %v694 = vpop.f32.mrf.mxu0
        %v695 = vadd.f32 %v490, %v694
        %696 = vmatmul.bf16.gmra.mxu0 %v550
        %v697 = vpop.f32.mrf.mxu0
        %v698 = vadd.f32 %v495, %v697
        %v699 = vpop.f32.mrf.mxu0
        %v700 = vadd.f32 %v500, %v699
        %701 = vmatmul.bf16.gmra.mxu0 %v551
        %v702 = vpop.f32.mrf.mxu0
        %v703 = vadd.f32 %v505, %v702
        %v704 = vpop.f32.mrf.mxu0
        %v705 = vadd.f32 %v510, %v704
        %706 = vdwg.mxu0
        %v707 = vmax.f32 %v570, 0.0
        %v708 = vmax.f32 %v619, 0.0
        %v709 = vmax.f32 %v668, 0.0
        %v710 = vmax.f32 %v572, 0.0
        %v711 = vmax.f32 %v621, 0.0
        %v712 = vmax.f32 %v670, 0.0
        %v713 = vmax.f32 %v575, 0.0
        %v714 = vmax.f32 %v624, 0.0
        %v715 = vmax.f32 %v673, 0.0
        %v716 = vmax.f32 %v577, 0.0
        %v717 = vmax.f32 %v626, 0.0
        %v718 = vmax.f32 %v675, 0.0
        %v719 = vmax.f32 %v580, 0.0
        %v720 = vmax.f32 %v629, 0.0
        %v721 = vmax.f32 %v678, 0.0
        %v722 = vmax.f32 %v582, 0.0
        %v723 = vmax.f32 %v631, 0.0
        %v724 = vmax.f32 %v680, 0.0
        %v725 = vmax.f32 %v585, 0.0
        %v726 = vmax.f32 %v634, 0.0
        %v727 = vmax.f32 %v683, 0.0
        %v728 = vmax.f32 %v587, 0.0
        %v729 = vmax.f32 %v636, 0.0
        %v730 = vmax.f32 %v685, 0.0
        %v731 = vmax.f32 %v590, 0.0
        %v732 = vmax.f32 %v639, 0.0
        %v733 = vmax.f32 %v688, 0.0
        %v734 = vmax.f32 %v592, 0.0
        %v735 = vmax.f32 %v641, 0.0
        %v736 = vmax.f32 %v690, 0.0
        %v737 = vmax.f32 %v595, 0.0
        %v738 = vmax.f32 %v644, 0.0
        %v739 = vmax.f32 %v693, 0.0
        %v740 = vmax.f32 %v597, 0.0
        %v741 = vmax.f32 %v646, 0.0
        %v742 = vmax.f32 %v695, 0.0
        %v743 = vmax.f32 %v600, 0.0
        %v744 = vmax.f32 %v649, 0.0
        %v745 = vmax.f32 %v698, 0.0
        %v746 = vmax.f32 %v602, 0.0
        %v747 = vmax.f32 %v651, 0.0
        %v748 = vmax.f32 %v700, 0.0
        %v749 = vmax.f32 %v605, 0.0
        %v750 = vmax.f32 %v654, 0.0
        %v751 = vmax.f32 %v703, 0.0
        %v752 = vmax.f32 %v607, 0.0
        %v753 = vmax.f32 %v656, 0.0
        %v754 = vmax.f32 %v705, 0.0
        %v755 = vld [vmem:[%s326] sm:$0xff]
        %v756 = vld [vmem:[%s326 + $0x8] sm:$0xff]
        %v757 = vld [vmem:[%s326 + $0x10] sm:$0xff]
        %v758 = vld [vmem:[%s326 + $0x18] sm:$0xff]
        %v759 = vld [vmem:[%s326 + $0x20] sm:$0xff]
        %v760 = vld [vmem:[%s326 + $0x28] sm:$0xff]
        %v761 = vld [vmem:[%s326 + $0x30] sm:$0xff]
        %v762 = vld [vmem:[%s326 + $0x38] sm:$0xff]
        %v763 = vld [vmem:[%s326 + $0x40] sm:$0xff]
        %v764 = vld [vmem:[%s326 + $0x48] sm:$0xff]
        %v765 = vld [vmem:[%s326 + $0x50] sm:$0xff]
        %v766 = vld [vmem:[%s326 + $0x58] sm:$0xff]
        %v767 = vld [vmem:[%s326 + $0x60] sm:$0xff]
        %v768 = vld [vmem:[%s326 + $0x68] sm:$0xff]
        %v769 = vld [vmem:[%s326 + $0x70] sm:$0xff]
        %v770 = vld [vmem:[%s326 + $0x78] sm:$0xff]
        %772 = vset.pattern.permute.xlu0 0
        %773 = vperm.xlu0 %772, %v755
        %v774 = vpop.permute.xlu0 %773
        %777 = vset.pattern.permute.xlu0 0
        %778 = vperm.xlu0 %777, %v756
        %v779 = vpop.permute.xlu0 %778
        %782 = vset.pattern.permute.xlu0 0
        %783 = vperm.xlu0 %782, %v757
        %v784 = vpop.permute.xlu0 %783
        %787 = vset.pattern.permute.xlu0 0
        %788 = vperm.xlu0 %787, %v758
        %v789 = vpop.permute.xlu0 %788
        %792 = vset.pattern.permute.xlu0 0
        %793 = vperm.xlu0 %792, %v759
        %v794 = vpop.permute.xlu0 %793
        %797 = vset.pattern.permute.xlu0 0
        %798 = vperm.xlu0 %797, %v760
        %v799 = vpop.permute.xlu0 %798
        %802 = vset.pattern.permute.xlu0 0
        %803 = vperm.xlu0 %802, %v761
        %v804 = vpop.permute.xlu0 %803
        %807 = vset.pattern.permute.xlu0 0
        %808 = vperm.xlu0 %807, %v762
        %v809 = vpop.permute.xlu0 %808
        %812 = vset.pattern.permute.xlu0 0
        %813 = vperm.xlu0 %812, %v763
        %v814 = vpop.permute.xlu0 %813
        %817 = vset.pattern.permute.xlu0 0
        %818 = vperm.xlu0 %817, %v764
        %v819 = vpop.permute.xlu0 %818
        %822 = vset.pattern.permute.xlu0 0
        %823 = vperm.xlu0 %822, %v765
        %v824 = vpop.permute.xlu0 %823
        %827 = vset.pattern.permute.xlu0 0
        %828 = vperm.xlu0 %827, %v766
        %v829 = vpop.permute.xlu0 %828
        %832 = vset.pattern.permute.xlu0 0
        %833 = vperm.xlu0 %832, %v767
        %v834 = vpop.permute.xlu0 %833
        %837 = vset.pattern.permute.xlu0 0
        %838 = vperm.xlu0 %837, %v768
        %v839 = vpop.permute.xlu0 %838
        %842 = vset.pattern.permute.xlu0 0
        %843 = vperm.xlu0 %842, %v769
        %v844 = vpop.permute.xlu0 %843
        %847 = vset.pattern.permute.xlu0 0
        %848 = vperm.xlu0 %847, %v770
        %v849 = vpop.permute.xlu0 %848
        %v851 = vadd.f32 %v707, %v774
        %v852 = vadd.f32 %v708, %v774
        %v853 = vadd.f32 %v709, %v774
        %v854 = vadd.f32 %v710, %v779
        %v855 = vadd.f32 %v711, %v779
        %v856 = vadd.f32 %v712, %v779
        %v857 = vadd.f32 %v713, %v784
        %v858 = vadd.f32 %v714, %v784
        %v859 = vadd.f32 %v715, %v784
        %v860 = vadd.f32 %v716, %v789
        %v861 = vadd.f32 %v717, %v789
        %v862 = vadd.f32 %v718, %v789
        %v863 = vadd.f32 %v719, %v794
        %v864 = vadd.f32 %v720, %v794
        %v865 = vadd.f32 %v721, %v794
        %v866 = vadd.f32 %v722, %v799
        %v867 = vadd.f32 %v723, %v799
        %v868 = vadd.f32 %v724, %v799
        %v869 = vadd.f32 %v725, %v804
        %v870 = vadd.f32 %v726, %v804
        %v871 = vadd.f32 %v727, %v804
        %v872 = vadd.f32 %v728, %v809
        %v873 = vadd.f32 %v729, %v809
        %v874 = vadd.f32 %v730, %v809
        %v875 = vadd.f32 %v731, %v814
        %v876 = vadd.f32 %v732, %v814
        %v877 = vadd.f32 %v733, %v814
        %v878 = vadd.f32 %v734, %v819
        %v879 = vadd.f32 %v735, %v819
        %v880 = vadd.f32 %v736, %v819
        %v881 = vadd.f32 %v737, %v824
        %v882 = vadd.f32 %v738, %v824
        %v883 = vadd.f32 %v739, %v824
        %v884 = vadd.f32 %v740, %v829
        %v885 = vadd.f32 %v741, %v829
        %v886 = vadd.f32 %v742, %v829
        %v887 = vadd.f32 %v743, %v834
        %v888 = vadd.f32 %v744, %v834
        %v889 = vadd.f32 %v745, %v834
        %v890 = vadd.f32 %v746, %v839
        %v891 = vadd.f32 %v747, %v839
        %v892 = vadd.f32 %v748, %v839
        %v893 = vadd.f32 %v749, %v844
        %v894 = vadd.f32 %v750, %v844
        %v895 = vadd.f32 %v751, %v844
        %v896 = vadd.f32 %v752, %v849
        %v897 = vadd.f32 %v753, %v849
        %v898 = vadd.f32 %v754, %v849
        %v899 = vpack.c.bf16 %v854, %v851
        %v900 = vpack.c.bf16 %v855, %v852
        %v901 = vpack.c.bf16 %v856, %v853
        %v902 = vpack.c.bf16 %v860, %v857
        %v903 = vpack.c.bf16 %v861, %v858
        %v904 = vpack.c.bf16 %v862, %v859
        %v905 = vpack.c.bf16 %v866, %v863
        %v906 = vpack.c.bf16 %v867, %v864
        %v907 = vpack.c.bf16 %v868, %v865
        %v908 = vpack.c.bf16 %v872, %v869
        %v909 = vpack.c.bf16 %v873, %v870
        %v910 = vpack.c.bf16 %v874, %v871
        %v911 = vpack.c.bf16 %v878, %v875
        %v912 = vpack.c.bf16 %v879, %v876
        %v913 = vpack.c.bf16 %v880, %v877
        %v914 = vpack.c.bf16 %v884, %v881
        %v915 = vpack.c.bf16 %v885, %v882
        %v916 = vpack.c.bf16 %v886, %v883
        %v917 = vpack.c.bf16 %v890, %v887
        %v918 = vpack.c.bf16 %v891, %v888
        %v919 = vpack.c.bf16 %v892, %v889
        %v920 = vpack.c.bf16 %v896, %v893
        %v921 = vpack.c.bf16 %v897, %v894
        %v922 = vpack.c.bf16 %v898, %v895
        %v923 = vld [vmem:[%s4] sm:$0xf]
        %v924 = vld [vmem:[%s4 + $0x4] sm:$0xf]
        %v925 = vld [vmem:[%s4 + $0x8] sm:$0xf]
        %v926 = vld [vmem:[%s4 + $0xc] sm:$0xf]
        %v927 = vld [vmem:[%s4 + $0x10] sm:$0xf]
        %v928 = vld [vmem:[%s4 + $0x14] sm:$0xf]
        %v929 = vld [vmem:[%s4 + $0x18] sm:$0xf]
        %v930 = vld [vmem:[%s4 + $0x1c] sm:$0xf]
        %v931 = vld [vmem:[%s4 + $0x20] sm:$0xf]
        %v932 = vld [vmem:[%s4 + $0x24] sm:$0xf]
        %v933 = vld [vmem:[%s4 + $0x28] sm:$0xf]
        %v934 = vld [vmem:[%s4 + $0x2c] sm:$0xf]
        %v935 = vld [vmem:[%s4 + $0x30] sm:$0xf]
        %v936 = vld [vmem:[%s4 + $0x34] sm:$0xf]
        %v937 = vld [vmem:[%s4 + $0x38] sm:$0xf]
        %v938 = vld [vmem:[%s4 + $0x3c] sm:$0xf]
        %v939 = vld [vmem:[%s5] sm:$0xff]
        %v940 = vld [vmem:[%s5 + $0x8] sm:$0xff]
        %v941 = vld [vmem:[%s5 + $0x10] sm:$0xff]
        %v942 = vld [vmem:[%s5 + $0x18] sm:$0xff]
        %v943 = vld [vmem:[%s5 + $0x20] sm:$0xff]
        %v944 = vld [vmem:[%s5 + $0x28] sm:$0xff]
        %v945 = vld [vmem:[%s5 + $0x30] sm:$0xff]
        %v946 = vld [vmem:[%s5 + $0x38] sm:$0xff]
        %v947 = vld [vmem:[%s5 + $0x40] sm:$0xff]
        %v948 = vld [vmem:[%s5 + $0x48] sm:$0xff]
        %v949 = vld [vmem:[%s5 + $0x50] sm:$0xff]
        %v950 = vld [vmem:[%s5 + $0x58] sm:$0xff]
        %v951 = vld [vmem:[%s5 + $0x60] sm:$0xff]
        %v952 = vld [vmem:[%s5 + $0x68] sm:$0xff]
        %v953 = vld [vmem:[%s5 + $0x70] sm:$0xff]
        %v954 = vld [vmem:[%s5 + $0x78] sm:$0xff]
        %956 = vset.pattern.permute.xlu0 0
        %957 = vperm.xlu0 %956, %v939
        %v958 = vpop.permute.xlu0 %957
        %961 = vset.pattern.permute.xlu0 0
        %962 = vperm.xlu0 %961, %v940
        %v963 = vpop.permute.xlu0 %962
        %966 = vset.pattern.permute.xlu0 0
        %967 = vperm.xlu0 %966, %v941
        %v968 = vpop.permute.xlu0 %967
        %971 = vset.pattern.permute.xlu0 0
        %972 = vperm.xlu0 %971, %v942
        %v973 = vpop.permute.xlu0 %972
        %976 = vset.pattern.permute.xlu0 0
        %977 = vperm.xlu0 %976, %v943
        %v978 = vpop.permute.xlu0 %977
        %981 = vset.pattern.permute.xlu0 0
        %982 = vperm.xlu0 %981, %v944
        %v983 = vpop.permute.xlu0 %982
        %986 = vset.pattern.permute.xlu0 0
        %987 = vperm.xlu0 %986, %v945
        %v988 = vpop.permute.xlu0 %987
        %991 = vset.pattern.permute.xlu0 0
        %992 = vperm.xlu0 %991, %v946
        %v993 = vpop.permute.xlu0 %992
        %996 = vset.pattern.permute.xlu0 0
        %997 = vperm.xlu0 %996, %v947
        %v998 = vpop.permute.xlu0 %997
        %1001 = vset.pattern.permute.xlu0 0
        %1002 = vperm.xlu0 %1001, %v948
        %v1003 = vpop.permute.xlu0 %1002
        %1006 = vset.pattern.permute.xlu0 0
        %1007 = vperm.xlu0 %1006, %v949
        %v1008 = vpop.permute.xlu0 %1007
        %1011 = vset.pattern.permute.xlu0 0
        %1012 = vperm.xlu0 %1011, %v950
        %v1013 = vpop.permute.xlu0 %1012
        %1016 = vset.pattern.permute.xlu0 0
        %1017 = vperm.xlu0 %1016, %v951
        %v1018 = vpop.permute.xlu0 %1017
        %1021 = vset.pattern.permute.xlu0 0
        %1022 = vperm.xlu0 %1021, %v952
        %v1023 = vpop.permute.xlu0 %1022
        %1026 = vset.pattern.permute.xlu0 0
        %1027 = vperm.xlu0 %1026, %v953
        %v1028 = vpop.permute.xlu0 %1027
        %1031 = vset.pattern.permute.xlu0 0
        %1032 = vperm.xlu0 %1031, %v954
        %v1033 = vpop.permute.xlu0 %1032
        %v1051 = vunpack.c.l.b16 %v923
        %v1052 = vunpack.c.l.b16 %v924
        %v1053 = vunpack.c.l.b16 %v925
        %v1054 = vunpack.c.l.b16 %v926
        %v1055 = vunpack.c.l.b16 %v927
        %v1056 = vunpack.c.l.b16 %v928
        %v1057 = vunpack.c.l.b16 %v929
        %v1058 = vunpack.c.l.b16 %v930
        %v1059 = vunpack.c.l.b16 %v931
        %v1060 = vunpack.c.l.b16 %v932
        %v1061 = vunpack.c.l.b16 %v933
        %v1062 = vunpack.c.l.b16 %v934
        %v1063 = vunpack.c.l.b16 %v935
        %v1064 = vunpack.c.l.b16 %v936
        %v1065 = vunpack.c.l.b16 %v937
        %v1066 = vunpack.c.l.b16 %v938
        %v1067 = vpack.c.b16 %v1052, %v1051
        %v1068 = vpack.c.b16 %v1054, %v1053
        %v1069 = vpack.c.b16 %v1056, %v1055
        %v1070 = vpack.c.b16 %v1058, %v1057
        %v1071 = vpack.c.b16 %v1060, %v1059
        %v1072 = vpack.c.b16 %v1062, %v1061
        %v1073 = vpack.c.b16 %v1064, %v1063
        %v1074 = vpack.c.b16 %v1066, %v1065
        %1083 = vmatpush.bf16.msra.mxu0 %v920
        %1084 = vmatpush.bf16.msra.mxu0 %v917
        %1085 = vmatpush.bf16.msra.mxu0 %v914
        %1086 = vmatpush.bf16.msra.mxu0 %v911
        %1087 = vmatpush.bf16.msra.mxu0 %v908
        %1088 = vmatpush.bf16.msra.mxu0 %v905
        %1089 = vmatpush.bf16.msra.mxu0 %v902
        %1090 = vmatpush.bf16.msra.mxu0 %v899
        %1091 = vmatmul.bf16.gmra.mxu0 %v1067
        %v1092 = vpop.f32.mrf.mxu0
        %v1093 = vadd.f32 %v958, %v1092
        %v1094 = vpop.f32.mrf.mxu0
        %v1095 = vadd.f32 %v963, %v1094
        %1096 = vmatmul.bf16.gmra.mxu0 %v1068
        %v1097 = vpop.f32.mrf.mxu0
        %v1098 = vadd.f32 %v968, %v1097
        %v1099 = vpop.f32.mrf.mxu0
        %v1100 = vadd.f32 %v973, %v1099
        %1101 = vmatmul.bf16.gmra.mxu0 %v1069
        %v1102 = vpop.f32.mrf.mxu0
        %v1103 = vadd.f32 %v978, %v1102
        %v1104 = vpop.f32.mrf.mxu0
        %v1105 = vadd.f32 %v983, %v1104
        %1106 = vmatmul.bf16.gmra.mxu0 %v1070
        %v1107 = vpop.f32.mrf.mxu0
        %v1108 = vadd.f32 %v988, %v1107
        %v1109 = vpop.f32.mrf.mxu0
        %v1110 = vadd.f32 %v993, %v1109
        %1111 = vmatmul.bf16.gmra.mxu0 %v1071
        %v1112 = vpop.f32.mrf.mxu0
        %v1113 = vadd.f32 %v998, %v1112
        %v1114 = vpop.f32.mrf.mxu0
        %v1115 = vadd.f32 %v1003, %v1114
        %1116 = vmatmul.bf16.gmra.mxu0 %v1072
        %v1117 = vpop.f32.mrf.mxu0
        %v1118 = vadd.f32 %v1008, %v1117
        %v1119 = vpop.f32.mrf.mxu0
        %v1120 = vadd.f32 %v1013, %v1119
        %1121 = vmatmul.bf16.gmra.mxu0 %v1073
        %v1122 = vpop.f32.mrf.mxu0
        %v1123 = vadd.f32 %v1018, %v1122
        %v1124 = vpop.f32.mrf.mxu0
        %v1125 = vadd.f32 %v1023, %v1124
        %1126 = vmatmul.bf16.gmra.mxu0 %v1074
        %v1127 = vpop.f32.mrf.mxu0
        %v1128 = vadd.f32 %v1028, %v1127
        %v1129 = vpop.f32.mrf.mxu0
        %v1130 = vadd.f32 %v1033, %v1129
        %1131 = vdwg.mxu0
        %1132 = vmatpush.bf16.msra.mxu0 %v921
        %1133 = vmatpush.bf16.msra.mxu0 %v918
        %1134 = vmatpush.bf16.msra.mxu0 %v915
        %1135 = vmatpush.bf16.msra.mxu0 %v912
        %1136 = vmatpush.bf16.msra.mxu0 %v909
        %1137 = vmatpush.bf16.msra.mxu0 %v906
        %1138 = vmatpush.bf16.msra.mxu0 %v903
        %1139 = vmatpush.bf16.msra.mxu0 %v900
        %1140 = vmatmul.bf16.gmra.mxu0 %v1067
        %v1141 = vpop.f32.mrf.mxu0
        %v1142 = vadd.f32 %v958, %v1141
        %v1143 = vpop.f32.mrf.mxu0
        %v1144 = vadd.f32 %v963, %v1143
        %1145 = vmatmul.bf16.gmra.mxu0 %v1068
        %v1146 = vpop.f32.mrf.mxu0
        %v1147 = vadd.f32 %v968, %v1146
        %v1148 = vpop.f32.mrf.mxu0
        %v1149 = vadd.f32 %v973, %v1148
        %1150 = vmatmul.bf16.gmra.mxu0 %v1069
        %v1151 = vpop.f32.mrf.mxu0
        %v1152 = vadd.f32 %v978, %v1151
        %v1153 = vpop.f32.mrf.mxu0
        %v1154 = vadd.f32 %v983, %v1153
        %1155 = vmatmul.bf16.gmra.mxu0 %v1070
        %v1156 = vpop.f32.mrf.mxu0
        %v1157 = vadd.f32 %v988, %v1156
        %v1158 = vpop.f32.mrf.mxu0
        %v1159 = vadd.f32 %v993, %v1158
        %1160 = vmatmul.bf16.gmra.mxu0 %v1071
        %v1161 = vpop.f32.mrf.mxu0
        %v1162 = vadd.f32 %v998, %v1161
        %v1163 = vpop.f32.mrf.mxu0
        %v1164 = vadd.f32 %v1003, %v1163
        %1165 = vmatmul.bf16.gmra.mxu0 %v1072
        %v1166 = vpop.f32.mrf.mxu0
        %v1167 = vadd.f32 %v1008, %v1166
        %v1168 = vpop.f32.mrf.mxu0
        %v1169 = vadd.f32 %v1013, %v1168
        %1170 = vmatmul.bf16.gmra.mxu0 %v1073
        %v1171 = vpop.f32.mrf.mxu0
        %v1172 = vadd.f32 %v1018, %v1171
        %v1173 = vpop.f32.mrf.mxu0
        %v1174 = vadd.f32 %v1023, %v1173
        %1175 = vmatmul.bf16.gmra.mxu0 %v1074
        %v1176 = vpop.f32.mrf.mxu0
        %v1177 = vadd.f32 %v1028, %v1176
        %v1178 = vpop.f32.mrf.mxu0
        %v1179 = vadd.f32 %v1033, %v1178
        %1180 = vdwg.mxu0
        %1181 = vmatpush.bf16.msra.mxu0 %v922
        %1182 = vmatpush.bf16.msra.mxu0 %v919
        %1183 = vmatpush.bf16.msra.mxu0 %v916
        %1184 = vmatpush.bf16.msra.mxu0 %v913
        %1185 = vmatpush.bf16.msra.mxu0 %v910
        %1186 = vmatpush.bf16.msra.mxu0 %v907
        %1187 = vmatpush.bf16.msra.mxu0 %v904
        %1188 = vmatpush.bf16.msra.mxu0 %v901
        %1189 = vmatmul.bf16.gmra.mxu0 %v1067
        %v1190 = vpop.f32.mrf.mxu0
        %v1191 = vadd.f32 %v958, %v1190
        %v1192 = vpop.f32.mrf.mxu0
        %v1193 = vadd.f32 %v963, %v1192
        %1194 = vmatmul.bf16.gmra.mxu0 %v1068
        %v1195 = vpop.f32.mrf.mxu0
        %v1196 = vadd.f32 %v968, %v1195
        %v1197 = vpop.f32.mrf.mxu0
        %v1198 = vadd.f32 %v973, %v1197
        %1199 = vmatmul.bf16.gmra.mxu0 %v1069
        %v1200 = vpop.f32.mrf.mxu0
        %v1201 = vadd.f32 %v978, %v1200
        %v1202 = vpop.f32.mrf.mxu0
        %v1203 = vadd.f32 %v983, %v1202
        %1204 = vmatmul.bf16.gmra.mxu0 %v1070
        %v1205 = vpop.f32.mrf.mxu0
        %v1206 = vadd.f32 %v988, %v1205
        %v1207 = vpop.f32.mrf.mxu0
        %v1208 = vadd.f32 %v993, %v1207
        %1209 = vmatmul.bf16.gmra.mxu0 %v1071
        %v1210 = vpop.f32.mrf.mxu0
        %v1211 = vadd.f32 %v998, %v1210
        %v1212 = vpop.f32.mrf.mxu0
        %v1213 = vadd.f32 %v1003, %v1212
        %1214 = vmatmul.bf16.gmra.mxu0 %v1072
        %v1215 = vpop.f32.mrf.mxu0
        %v1216 = vadd.f32 %v1008, %v1215
        %v1217 = vpop.f32.mrf.mxu0
        %v1218 = vadd.f32 %v1013, %v1217
        %1219 = vmatmul.bf16.gmra.mxu0 %v1073
        %v1220 = vpop.f32.mrf.mxu0
        %v1221 = vadd.f32 %v1018, %v1220
        %v1222 = vpop.f32.mrf.mxu0
        %v1223 = vadd.f32 %v1023, %v1222
        %1224 = vmatmul.bf16.gmra.mxu0 %v1074
        %v1225 = vpop.f32.mrf.mxu0
        %v1226 = vadd.f32 %v1028, %v1225
        %v1227 = vpop.f32.mrf.mxu0
        %v1228 = vadd.f32 %v1033, %v1227
        %1229 = vdwg.mxu0
        %v1230 = vmax.f32 %v1093, 0.0
        %v1231 = vmax.f32 %v1142, 0.0
        %v1232 = vmax.f32 %v1191, 0.0
        %v1233 = vmax.f32 %v1095, 0.0
        %v1234 = vmax.f32 %v1144, 0.0
        %v1235 = vmax.f32 %v1193, 0.0
        %v1236 = vmax.f32 %v1098, 0.0
        %v1237 = vmax.f32 %v1147, 0.0
        %v1238 = vmax.f32 %v1196, 0.0
        %v1239 = vmax.f32 %v1100, 0.0
        %v1240 = vmax.f32 %v1149, 0.0
        %v1241 = vmax.f32 %v1198, 0.0
        %v1242 = vmax.f32 %v1103, 0.0
        %v1243 = vmax.f32 %v1152, 0.0
        %v1244 = vmax.f32 %v1201, 0.0
        %v1245 = vmax.f32 %v1105, 0.0
        %v1246 = vmax.f32 %v1154, 0.0
        %v1247 = vmax.f32 %v1203, 0.0
        %v1248 = vmax.f32 %v1108, 0.0
        %v1249 = vmax.f32 %v1157, 0.0
        %v1250 = vmax.f32 %v1206, 0.0
        %v1251 = vmax.f32 %v1110, 0.0
        %v1252 = vmax.f32 %v1159, 0.0
        %v1253 = vmax.f32 %v1208, 0.0
        %v1254 = vmax.f32 %v1113, 0.0
        %v1255 = vmax.f32 %v1162, 0.0
        %v1256 = vmax.f32 %v1211, 0.0
        %v1257 = vmax.f32 %v1115, 0.0
        %v1258 = vmax.f32 %v1164, 0.0
        %v1259 = vmax.f32 %v1213, 0.0
        %v1260 = vmax.f32 %v1118, 0.0
        %v1261 = vmax.f32 %v1167, 0.0
        %v1262 = vmax.f32 %v1216, 0.0
        %v1263 = vmax.f32 %v1120, 0.0
        %v1264 = vmax.f32 %v1169, 0.0
        %v1265 = vmax.f32 %v1218, 0.0
        %v1266 = vmax.f32 %v1123, 0.0
        %v1267 = vmax.f32 %v1172, 0.0
        %v1268 = vmax.f32 %v1221, 0.0
        %v1269 = vmax.f32 %v1125, 0.0
        %v1270 = vmax.f32 %v1174, 0.0
        %v1271 = vmax.f32 %v1223, 0.0
        %v1272 = vmax.f32 %v1128, 0.0
        %v1273 = vmax.f32 %v1177, 0.0
        %v1274 = vmax.f32 %v1226, 0.0
        %v1275 = vmax.f32 %v1130, 0.0
        %v1276 = vmax.f32 %v1179, 0.0
        %v1277 = vmax.f32 %v1228, 0.0
        %v1278 = vpack.c.bf16 %v1233, %v1230
        %v1279 = vpack.c.bf16 %v1234, %v1231
        %v1280 = vpack.c.bf16 %v1235, %v1232
        %v1281 = vpack.c.bf16 %v1239, %v1236
        %v1282 = vpack.c.bf16 %v1240, %v1237
        %v1283 = vpack.c.bf16 %v1241, %v1238
        %v1284 = vpack.c.bf16 %v1245, %v1242
        %v1285 = vpack.c.bf16 %v1246, %v1243
        %v1286 = vpack.c.bf16 %v1247, %v1244
        %v1287 = vpack.c.bf16 %v1251, %v1248
        %v1288 = vpack.c.bf16 %v1252, %v1249
        %v1289 = vpack.c.bf16 %v1253, %v1250
        %v1290 = vpack.c.bf16 %v1257, %v1254
        %v1291 = vpack.c.bf16 %v1258, %v1255
        %v1292 = vpack.c.bf16 %v1259, %v1256
        %v1293 = vpack.c.bf16 %v1263, %v1260
        %v1294 = vpack.c.bf16 %v1264, %v1261
        %v1295 = vpack.c.bf16 %v1265, %v1262
        %v1296 = vpack.c.bf16 %v1269, %v1266
        %v1297 = vpack.c.bf16 %v1270, %v1267
        %v1298 = vpack.c.bf16 %v1271, %v1268
        %v1299 = vpack.c.bf16 %v1275, %v1272
        %v1300 = vpack.c.bf16 %v1276, %v1273
        %v1301 = vpack.c.bf16 %v1277, %v1274
        %v1302 = vld [vmem:[%s6] sm:$0x1]
        %1303 = vmatpush.bf16.msra.mxu0 %v1299
        %1304 = vmatpush.bf16.msra.mxu0 %v1296
        %1305 = vmatpush.bf16.msra.mxu0 %v1293
        %1306 = vmatpush.bf16.msra.mxu0 %v1290
        %1307 = vmatpush.bf16.msra.mxu0 %v1287
        %1308 = vmatpush.bf16.msra.mxu0 %v1284
        %1309 = vmatpush.bf16.msra.mxu0 %v1281
        %1310 = vmatpush.bf16.msra.mxu0 %v1278
        %1311 = vmatmul.bf16.gmra.mxu0 %v1302
        %v1312 = vpop.f32.mrf.mxu0
        %v1313 = vadd.f32 0.0, %v1312
        %v1314 = vpop.f32.mrf.mxu0
        %1315 = vdwg.mxu0
        %1316 = vmatpush.bf16.msra.mxu0 %v1300
        %1317 = vmatpush.bf16.msra.mxu0 %v1297
        %1318 = vmatpush.bf16.msra.mxu0 %v1294
        %1319 = vmatpush.bf16.msra.mxu0 %v1291
        %1320 = vmatpush.bf16.msra.mxu0 %v1288
        %1321 = vmatpush.bf16.msra.mxu0 %v1285
        %1322 = vmatpush.bf16.msra.mxu0 %v1282
        %1323 = vmatpush.bf16.msra.mxu0 %v1279
        %1324 = vmatmul.bf16.gmra.mxu0 %v1302
        %v1325 = vpop.f32.mrf.mxu0
        %v1326 = vadd.f32 0.0, %v1325
        %v1327 = vpop.f32.mrf.mxu0
        %1328 = vdwg.mxu0
        %1329 = vmatpush.bf16.msra.mxu0 %v1301
        %1330 = vmatpush.bf16.msra.mxu0 %v1298
        %1331 = vmatpush.bf16.msra.mxu0 %v1295
        %1332 = vmatpush.bf16.msra.mxu0 %v1292
        %1333 = vmatpush.bf16.msra.mxu0 %v1289
        %1334 = vmatpush.bf16.msra.mxu0 %v1286
        %1335 = vmatpush.bf16.msra.mxu0 %v1283
        %1336 = vmatpush.bf16.msra.mxu0 %v1280
        %1337 = vmatmul.bf16.gmra.mxu0 %v1302
        %v1338 = vpop.f32.mrf.mxu0
        %v1339 = vadd.f32 0.0, %v1338
        %v1340 = vpop.f32.mrf.mxu0
        %1341 = vdwg.mxu0
        %v1345 = vrot.slane %v1313, 7
        %v1346 = vrot.slane %v1326, 7
        %v1347 = vrot.slane %v1339, 7
        %v1351 = vsub.f32 %v1313, %v1345
        %v1352 = vsub.f32 %v1326, %v1346
        %v1353 = vsub.f32 %v1339, %v1347
        %v1354 = vmax.f32 %v1351, 0.0
        %v1355 = vmax.f32 %v1352, 0.0
        %v1356 = vmax.f32 %v1353, 0.0
        %v1360 = vrot.slane %v1354, 1
        %v1361 = vrot.slane %v1355, 1
        %v1362 = vrot.slane %v1356, 1
        %v1366 = vadd.f32 %v1313, %v1360
        %v1367 = vadd.f32 %v1326, %v1361
        %v1368 = vadd.f32 %v1339, %v1362
        %v1369 = vand.u32 2147483647, %v1351
        %v1370 = vand.u32 2147483647, %v1352
        %v1371 = vand.u32 2147483647, %v1353
        %v1372 = vsub.f32 0.0, %v1369
        %v1373 = vsub.f32 0.0, %v1370
        %v1374 = vsub.f32 0.0, %v1371
        %v1375 = vmul.f32 %v1372, 1.442695
        %v1376 = vpow.pop %v1375
        %v1377 = vmul.f32 %v1373, 1.442695
        %v1378 = vpow.pop %v1377
        %v1379 = vmul.f32 %v1374, 1.442695
        %v1380 = vpow.pop %v1379
        %v1381 = vadd.f32 %v1376, 1.0
        %v1382 = vadd.f32 %v1378, 1.0
        %v1383 = vadd.f32 %v1380, 1.0
        %v1384 = vlog2.pop %v1381
        %v1385 = vmul.f32 %v1384, 0.6931472
        %v1386 = vlog2.pop %v1382
        %v1387 = vmul.f32 %v1386, 0.6931472
        %v1388 = vlog2.pop %v1383
        %v1389 = vmul.f32 %v1388, 0.6931472
        %v1393 = vrot.slane %v1385, 1
        %v1394 = vrot.slane %v1387, 1
        %v1395 = vrot.slane %v1389, 1
        %v1399 = vadd.f32 %v1366, %v1393
        %v1400 = vadd.f32 %v1367, %v1394
        %v1401 = vadd.f32 %v1368, %v1395
        %v1402 = vperm.slane %v1399, 0
        %v1403 = vperm.slane %v1400, 0
        %v1404 = vperm.slane %v1401, 0
        %v1405 = vsub.f32 %v1313, %v1402
        %v1406 = vsub.f32 %v1326, %v1403
        %v1407 = vsub.f32 %v1339, %v1404
        %v1411 = vrot.slane %v1406, 6
        %v1412 = vrot.slane %v1407, 4
        %vm1413 = vcmask 1041408
        %v1414 = vsel %vm1413, %v1405, %v1411
        %vm1415 = vcmask 1043456
        %v1416 = vsel %vm1415, %v1414, %v1412
        %1418 = vst [vmem:[%s311] sm:$0x3f] %v1416
        %s1419 = sand.u32 %s202, 1
        %s1420 = scalar_lea.sflag [#allocation3], %s1419
        %s1421 = sand.u32 %s202, 1
        %s1422 = smul.addr %s1421, 6
        %s1423 = scalar_lea.vmem [#allocation2], %s1422
        // Predicated region
        $region49: #{_automark_forward.1} parent=47 // pred_check
          %p1424 = pneg %p212
        $region50: #{_automark_forward.1} parent=47 // pred_check_branch
          %1426 = sbr.rel (%p1424) target = $region52
        $region51: #{_automark_forward.1} parent=47 // pred_region
          %s1427 = smul.u32 3, %s26
          %1429 = vsyncadd %s1420, 0
          %s1430 = smul.addr %s25, 3
          %s1431 = sadd.s32 %s1427, %s1430
          %s1432 = smul.addr %s1431, 2
          %s1433 = scalar_lea.hbm %s7, %s1432
          %s1435 = sshll.u32 %s1423, 4
          %s1436 = int_to_ptr.vmem [resolvable:$true] %s1435
          %s1437 = sshll.u32 %s1433, 4
          %s1438 = int_to_ptr.hbm [resolvable:$true] %s1437
          %1440 = dma.vmem_to_hbm [thread:$0]  %s1436, 96, %s1438, %s1420
        $region52: #{_automark_forward.1} parent=47 // pred_fallthru
          _
      $region48: #{_automark_forward.1} parent=5 // pred_fallthru
        _
      %p1441 = scmp.le.s32.totalorder 2, %s16
      // Predicated region
      $region53: #{_automark_forward.1} parent=5 // pred_check
        %p1442 = pneg %p1441
      $region54: #{_automark_forward.1} parent=5 // pred_check_branch
        %1444 = sbr.rel (%p1442) target = $region56
      $region55: #{_automark_forward.1} parent=5 // pred_region
        %s1445 = ssub.s32 %s16, 2
        // Predicated region
        $region57: #{_automark_forward.1} parent=55 // pred_check
          %p1446 = pneg %p218
        $region58: #{_automark_forward.1} parent=55 // pred_check_branch
          %1448 = sbr.rel (%p1446) target = $region60
        $region59: #{_automark_forward.1} parent=55 // pred_region
          %s1449 = sand.u32 %s203, 1
          %s1450 = scalar_lea.sflag [#allocation3], %s1449
          %s1451 = sand.u32 %s203, 1
          %s1452 = smul.addr %s1451, 6
          %s1453 = scalar_lea.vmem [#allocation2], %s1452
          %1455 = dma.done %s1450, 96
        $region60: #{_automark_forward.1} parent=55 // pred_fallthru
          _
      $region56: #{_automark_forward.1} parent=5 // pred_fallthru
        _
    $region6: #{_automark_forward.1} parent=1 // loop_footer
      %s20 = sadd.s32 1, %s16
    $region7: #{_automark_forward.1} parent=1 // loop_footer_branch
      %15 = sbr.rel target = $region3
    $region8: #{_automark_forward.1} parent=1 // loop_exit
      _
    %1456 = vsyncpa [#allocation3], 1
    %s1457 = scalar_lea.sflag [#allocation3], 1
    %1458 = vsyncpa %s1457, 1

</llo_original>
